<compile_context>
chip_gen: v5e
topology: v5e:2x2
jax: 0.10.0
libtpu: 0.0.40
codegen_flags: <defaults>
</compile_context>

<pallas_src>
import functools

import jax
import jax.numpy as jnp
from jax.experimental import pallas as pl
from jax.experimental.pallas import tpu as pltpu


def _round_up(v, m):
    return ((v + m - 1) // m) * m


def _attn_kernel(x_ref, w_ref, b_ref, o_ref, l_sc, acc_sc, *,
                 t_valid, block_t, need_mask):
    # x_ref: (Bb, Tk, H) VMEM   w_ref: (1, 1, H) VMEM   b_ref: (1, 1) SMEM
    # o_ref: (Bb, H)            scratch: l_sc (Bb, 1) f32, acc_sc (Bb, H) f32
    t = pl.program_id(1)

    @pl.when(t == 0)
    def _init():
        l_sc[...] = jnp.zeros(l_sc.shape, l_sc.dtype)
        acc_sc[...] = jnp.zeros(acc_sc.shape, acc_sc.dtype)

    # Single cast, reused by both the logits and the weighted sum.
    # TODO(synk): for bf16 inputs keep x bf16 for the p*x product (halves HBM
    # traffic / VMEM) and only upcast the small (Bb, Tk) logits.
    xf = x_ref[...].astype(jnp.float32)                     # (Bb, Tk, H)

    # Linear(H -> 1) + bias on the VPU: broadcast multiply by the (1,1,H)
    # weight (implicit broadcast, no copy) and lane-reduce over H.
    s = jnp.sum(xf * w_ref[...], axis=-1) + b_ref[0, 0]     # (Bb, Tk)
    a = jnp.tanh(s)                                         # in [-1, 1]

    # exp of a bounded value: no running max needed, exact softmax weights.
    p = jnp.exp(a)                                          # (Bb, Tk)

    if need_mask:  # only emitted when T was padded; masked p is simply 0
        t_ids = t * block_t + jax.lax.broadcasted_iota(jnp.int32, p.shape, 1)
        p = jnp.where(t_ids < t_valid, p, 0.0)

    # Accumulate softmax denominator and the fused weighted sum over T
    # (sublane-axis reduce; the only heavy VALU work is the two multiplies).
    l_sc[...] += jnp.sum(p, axis=-1, keepdims=True)         # (Bb, 1)
    acc_sc[...] += jnp.sum(p[:, :, None] * xf, axis=1)      # (Bb, H)

    @pl.when(t == pl.num_programs(1) - 1)
    def _finalize():
        o_ref[...] = (acc_sc[...] *
                      pl.reciprocal(l_sc[...], approx=False)).astype(o_ref.dtype)


def _vmem_config():
    """Return (per-block x budget, scoped VMEM limit) tuned per generation."""
    phys = 64 * 1024 * 1024
    try:
        phys = pltpu.get_tpu_info().vmem_capacity_bytes
    except Exception:
        pass  # conservative fallback works on every generation
    if phys >= 96 * 1024 * 1024:
        # v5e / v6e: 128 MiB physical VMEM, single TensorCore.
        return 14 * 1024 * 1024, 80 * 1024 * 1024, False
    # v7x: 64 MiB physical VMEM, 2 TensorCores; x block is double-buffered.
    return 8 * 1024 * 1024, 48 * 1024 * 1024, True


def _choose_blocks(B, T, H, itemsize, budget, keep_two_batch_steps):
    """Pick (block_b, block_t). block_b multiple of 8; block_t is either the
    full T or a multiple of 128 (lane axis of the logits)."""
    row_bytes = max(T * H * itemsize, 1)
    if 8 * row_bytes <= budget:
        block_t = T                               # full sequence per step
        block_b = min(_round_up(B, 8), max(8, (budget // row_bytes) // 8 * 8))
        if keep_two_batch_steps and B > 8:
            # v7x: keep >= 2 steps on the parallel batch axis for 2 TCs.
            block_b = min(block_b, _round_up(pl.cdiv(B, 2), 8))
    else:
        block_b = 8
        block_t = max(128, (budget // (8 * H * itemsize)) // 128 * 128)
        block_t = min(block_t, _round_up(T, 128))
    return block_b, block_t


def attn_forward(x, weight, bias, *, block_b=None, block_t=None):
    """x: (B, T, H); weight: (1, H) (PyTorch Linear layout); bias: (1,) -> (B, H)."""
    B, T, H = x.shape
    budget, vmem_limit, two_cores = _vmem_config()
    bb, bt = _choose_blocks(B, T, H, x.dtype.itemsize, budget, two_cores)
    block_b = bb if block_b is None else block_b
    block_t = bt if block_t is None else block_t

    B_pad = _round_up(B, block_b)
    T_pad = _round_up(T, block_t)
    if (B_pad, T_pad) != (B, T):
        x = jnp.pad(x, ((0, B_pad - B), (0, T_pad - T), (0, 0)))

    w = weight.reshape(1, 1, H).astype(jnp.float32)
    b = bias.reshape(1, 1).astype(jnp.float32)

    grid = (B_pad // block_b, T_pad // block_t)
    kernel = functools.partial(_attn_kernel, t_valid=T, block_t=block_t,
                               need_mask=(T_pad != T))

    out = pl.pallas_call(
        kernel,
        out_shape=jax.ShapeDtypeStruct((B_pad, H), x.dtype),
        grid_spec=pltpu.PrefetchScalarGridSpec(
            num_scalar_prefetch=0,
            grid=grid,
            in_specs=[
                pl.BlockSpec((block_b, block_t, H), lambda i, t: (i, t, 0)),
                pl.BlockSpec((1, 1, H), lambda i, t: (0, 0, 0)),
                pl.BlockSpec(memory_space=pltpu.MemorySpace.SMEM),  # bias scalar
            ],
            out_specs=pl.BlockSpec((block_b, H), lambda i, t: (i, 0)),
            scratch_shapes=[
                pltpu.VMEM((block_b, 1), jnp.float32),   # softmax denominator
                pltpu.VMEM((block_b, H), jnp.float32),   # weighted sum
            ],
        ),
        compiler_params=pltpu.CompilerParams(
            dimension_semantics=("parallel", "arbitrary"),
            vmem_limit_bytes=vmem_limit,
        ),
    )(x, w, b)
    # Padded batch rows hold finite zeros and are sliced off here.
    return out[:B, :]


def attn_reference(x, weight, bias):
    """Pure-JAX reference mirroring the PyTorch forward (exact f32 math)."""
    logits = jnp.sum(x * weight[0][None, None, :], axis=-1, keepdims=True) + bias
    att = jax.nn.softmax(jnp.tanh(logits), axis=1)       # (B, T, 1)
    return jnp.sum(att * x, axis=1)                       # (B, H)


if __name__ == "__main__":
    key = jax.random.PRNGKey(0)
    kx, kw, kb = jax.random.split(key, 3)

    B, T, H = 2, 8, 32
    x = jax.random.normal(kx, (B, T, H), dtype=jnp.float32)

    # Deterministic parameter init (shapes from nn.Linear(hidden_size, 1))
    bound = 1.0 / (H ** 0.5)
    weight = jax.random.uniform(kw, (1, H), minval=-bound, maxval=bound,
                                dtype=jnp.float32)
    bias = jax.random.uniform(kb, (1,), minval=-bound, maxval=bound,
                              dtype=jnp.float32)

    out = attn_forward(x, weight, bias)
    out = jax.block_until_ready(out)

    ref = attn_reference(x, weight, bias)
    assert out.shape == (B, H)
    assert jnp.allclose(out, ref, atol=1e-5, rtol=1e-5), (
        "mismatch vs reference: max abs err = "
        f"{jnp.max(jnp.abs(out - ref))}")

    print("KERNEL_OK")
</pallas_src>

<mosaic_0001>
module attributes {stable_mosaic.version = 11 : i64} {
  func.func @_attn_kernel(%arg0: i32, %arg1: i32, %arg2: memref<8x8x32xf32, #tpu.memory_space<vmem>>, %arg3: memref<1x1x32xf32, #tpu.memory_space<vmem>>, %arg4: memref<1x1xf32, #tpu.memory_space<smem>>, %arg5: memref<8x32xf32, #tpu.memory_space<vmem>>, %arg6: memref<8x1xf32, #tpu.memory_space<vmem>>, %arg7: memref<8x32xf32, #tpu.memory_space<vmem>>) attributes {dimension_semantics = [#tpu.dimension_semantics<parallel>, #tpu.dimension_semantics<arbitrary>], iteration_bounds = array<i64: 1, 1>, scalar_prefetch = 0 : i64, scratch_operands = 2 : i64, tpu.core_type = #tpu.core_type<tc>, window_params = [{transform_indices = @transform_0, window_bounds = array<i64: 8, 8, 32>}, {pipeline_mode = #tpu.pipeline_mode<synchronous>, transform_indices = @transform_1, window_bounds = array<i64: 1, 1, 32>}, {transform_indices = @transform_2, window_bounds = array<i64: 1, 1>}, {transform_indices = @transform_3, window_bounds = array<i64: 8, 32>}]} {
    %c0_i32 = arith.constant 0 : i32
    %0 = arith.cmpi eq, %arg1, %c0_i32 : i32
    %1 = arith.extui %0 : i1 to i32
    %c0_i32_0 = arith.constant 0 : i32
    %2 = arith.cmpi ne, %1, %c0_i32_0 : i32
    scf.if %2 {
      %cst_20 = arith.constant 0.000000e+00 : f32
      %28 = vector.broadcast %cst_20 : f32 to vector<8x1xf32>
      %c0_21 = arith.constant 0 : index
      %c0_22 = arith.constant 0 : index
      %29 = vector.load %arg6[%c0_21, %c0_22] : memref<8x1xf32, #tpu.memory_space<vmem>>, vector<8x1xf32>
      tpu.vector_store %arg6[%c0_21, %c0_22], %28 {strides = array<i32>} : memref<8x1xf32, #tpu.memory_space<vmem>>, vector<8x1xf32>,
      %cst_23 = arith.constant 0.000000e+00 : f32
      %30 = vector.broadcast %cst_23 : f32 to vector<8x32xf32>
      %c0_24 = arith.constant 0 : index
      %c0_25 = arith.constant 0 : index
      %31 = vector.load %arg7[%c0_24, %c0_25] : memref<8x32xf32, #tpu.memory_space<vmem>>, vector<8x32xf32>
      tpu.vector_store %arg7[%c0_24, %c0_25], %30 {strides = array<i32>} : memref<8x32xf32, #tpu.memory_space<vmem>>, vector<8x32xf32>,
    } else {
    }
    %c0 = arith.constant 0 : index
    %c0_1 = arith.constant 0 : index
    %c0_2 = arith.constant 0 : index
    %3 = vector.load %arg2[%c0, %c0_1, %c0_2] : memref<8x8x32xf32, #tpu.memory_space<vmem>>, vector<8x8x32xf32>
    %c0_3 = arith.constant 0 : index
    %c0_4 = arith.constant 0 : index
    %c0_5 = arith.constant 0 : index
    %4 = vector.load %arg3[%c0_3, %c0_4, %c0_5] : memref<1x1x32xf32, #tpu.memory_space<vmem>>, vector<1x1x32xf32>
    %5 = vector.broadcast %4 : vector<1x1x32xf32> to vector<8x8x32xf32>
    %6 = arith.mulf %3, %5 : vector<8x8x32xf32>
    %cst = arith.constant dense<0.000000e+00> : vector<8x8xf32>
    %7 = vector.multi_reduction <add>, %6, %cst [2] : vector<8x8x32xf32> to vector<8x8xf32>
    %c0_6 = arith.constant 0 : index
    %c0_7 = arith.constant 0 : index
    %8 = memref.load %arg4[%c0_6, %c0_7] : memref<1x1xf32, #tpu.memory_space<smem>>
    %9 = vector.broadcast %8 : f32 to vector<8x8xf32>
    %10 = arith.addf %7, %9 : vector<8x8xf32>
    %11 = math.tanh %10 : vector<8x8xf32>
    %12 = math.exp %11 : vector<8x8xf32>
    %c0_8 = arith.constant 0 : index
    %c0_9 = arith.constant 0 : index
    %13 = vector.load %arg6[%c0_8, %c0_9] : memref<8x1xf32, #tpu.memory_space<vmem>>, vector<8x1xf32>
    %cst_10 = arith.constant dense<0.000000e+00> : vector<8xf32>
    %14 = vector.multi_reduction <add>, %12, %cst_10 [1] : vector<8x8xf32> to vector<8xf32>
    %15 = vector.shape_cast %14 : vector<8xf32> to vector<8x1xf32>
    %16 = arith.addf %13, %15 : vector<8x1xf32>
    %c0_11 = arith.constant 0 : index
    %c0_12 = arith.constant 0 : index
    %17 = vector.load %arg6[%c0_11, %c0_12] : memref<8x1xf32, #tpu.memory_space<vmem>>, vector<8x1xf32>
    tpu.vector_store %arg6[%c0_11, %c0_12], %16 {strides = array<i32>} : memref<8x1xf32, #tpu.memory_space<vmem>>, vector<8x1xf32>,
    %c0_13 = arith.constant 0 : index
    %c0_14 = arith.constant 0 : index
    %18 = vector.load %arg7[%c0_13, %c0_14] : memref<8x32xf32, #tpu.memory_space<vmem>>, vector<8x32xf32>
    %19 = vector.shape_cast %12 : vector<8x8xf32> to vector<8x8x1xf32>
    %20 = vector.broadcast %19 : vector<8x8x1xf32> to vector<8x8x32xf32>
    %21 = arith.mulf %20, %3 : vector<8x8x32xf32>
    %cst_15 = arith.constant dense<0.000000e+00> : vector<8x32xf32>
    %22 = vector.multi_reduction <add>, %21, %cst_15 [1] : vector<8x8x32xf32> to vector<8x32xf32>
    %23 = arith.addf %18, %22 : vector<8x32xf32>
    %c0_16 = arith.constant 0 : index
    %c0_17 = arith.constant 0 : index
    %24 = vector.load %arg7[%c0_16, %c0_17] : memref<8x32xf32, #tpu.memory_space<vmem>>, vector<8x32xf32>
    tpu.vector_store %arg7[%c0_16, %c0_17], %23 {strides = array<i32>} : memref<8x32xf32, #tpu.memory_space<vmem>>, vector<8x32xf32>,
    %c0_i32_18 = arith.constant 0 : i32
    %25 = arith.cmpi eq, %arg1, %c0_i32_18 : i32
    %26 = arith.extui %25 : i1 to i32
    %c0_i32_19 = arith.constant 0 : i32
    %27 = arith.cmpi ne, %26, %c0_i32_19 : i32
    scf.if %27 {
      %c0_20 = arith.constant 0 : index
      %c0_21 = arith.constant 0 : index
      %28 = vector.load %arg7[%c0_20, %c0_21] : memref<8x32xf32, #tpu.memory_space<vmem>>, vector<8x32xf32>
      %c0_22 = arith.constant 0 : index
      %c0_23 = arith.constant 0 : index
      %29 = vector.load %arg6[%c0_22, %c0_23] : memref<8x1xf32, #tpu.memory_space<vmem>>, vector<8x1xf32>
      %30 = tpu.reciprocal %29 : vector<8x1xf32> -> vector<8x1xf32>
      %31 = vector.broadcast %30 : vector<8x1xf32> to vector<8x32xf32>
      %32 = arith.mulf %28, %31 : vector<8x32xf32>
      %c0_24 = arith.constant 0 : index
      %c0_25 = arith.constant 0 : index
      %33 = vector.load %arg5[%c0_24, %c0_25] : memref<8x32xf32, #tpu.memory_space<vmem>>, vector<8x32xf32>
      tpu.vector_store %arg5[%c0_24, %c0_25], %32 {strides = array<i32>} : memref<8x32xf32, #tpu.memory_space<vmem>>, vector<8x32xf32>,
    } else {
    }
    return
  }
  func.func @transform_0(%arg0: i32, %arg1: i32) -> (i32, i32, i32) {
    %c0_i32 = arith.constant 0 : i32
    %c0_i32_0 = arith.constant 0 : i32
    return %arg0, %arg1, %c0_i32 : i32, i32, i32
  }
  func.func @transform_1(%arg0: i32, %arg1: i32) -> (i32, i32, i32) {
    %c0_i32 = arith.constant 0 : i32
    %c0_i32_0 = arith.constant 0 : i32
    %c0_i32_1 = arith.constant 0 : i32
    %c0_i32_2 = arith.constant 0 : i32
    return %c0_i32, %c0_i32_0, %c0_i32_1 : i32, i32, i32
  }
  func.func @transform_2(%arg0: i32, %arg1: i32) -> (i32, i32) {
    %c0_i32 = arith.constant 0 : i32
    %c0_i32_0 = arith.constant 0 : i32
    %c0_i32_1 = arith.constant 0 : i32
    return %c0_i32, %c0_i32_0 : i32, i32
  }
  func.func @transform_3(%arg0: i32, %arg1: i32) -> (i32, i32) {
    %c0_i32 = arith.constant 0 : i32
    %c0_i32_0 = arith.constant 0 : i32
    return %arg0, %c0_i32 : i32, i32
  }
}

</mosaic_0001>

<llo_original>
// kernel: tpu_custom_call.1
$region0: #{tpu_custom_call.1}
  #allocation0 [shape = 'u32[]', space=smem, size = 0x4, offset = 0x4, fixed_abs, tag = 'smem constant byte address 0x4 - core index']
  #allocation1 [shape = 'u32[72,128]{1,0:T(1,128)}', space=vmem, size = 0x9000, scoped, tag = 'internal scratch']
  #allocation2 [shape = 'f32[8,1]{1,0:T(8,128)}', space=vmem, size = 0x1000, scoped, tag = 'scratch operand']
  #allocation3 [shape = 'f32[8,32]{1,0:T(8,128)}', space=vmem, size = 0x1000, scoped, tag = 'scratch operand']
  #allocation4 [shape = 'f32[1,1]{1,0:T(1,128)S(6)}', space=smem, size = 0x200, scoped, tag = 'scoped memory for tpu_custom_call.1']
  %s0 = inlined_call_operand.hbm [shape: f32[8,8,32], index: 0, kind: input, shape index: {}]
  %s1 = inlined_call_operand.vmem [shape: f32[1,1,32], index: 1, kind: input, shape index: {}]
  %s2 = inlined_call_operand.<no memory space> [shape: f32[1,1], index: 2, kind: input, shape index: {}]
  %s3 = inlined_call_operand.hbm [shape: f32[8,32], index: 3, kind: output, shape index: {}]
  %s4 = sld [smem:[#allocation0]]
  $region34: #{tpu_custom_call.1} parent=0
    _
  %s6 = ssub.s32 1, %s4
  %s7 = scalar_select 0, %s6, %s4
  %8 = sst [smem:[#allocation4]] %s2
  $region1: #{tpu_custom_call.1} parent=0
    #allocation5 [shape = 'u8[32768]{0}', space=vmem, size = 0x8000, scoped, tag = 'input window, operand 0, single buffered']
    #allocation6 [shape = 's32[1]{0}', space=sflag, size = 0x4, scoped, tag = 'scoped memory for tpu_custom_call.1']
    #allocation7 [shape = 's32[1]{0}', space=sflag, size = 0x4, scoped, tag = 'scoped memory for tpu_custom_call.1']
    #allocation8 [shape = 'u8[4096]{0}', space=vmem, size = 0x1000, scoped, tag = 'output window, operand 0, single buffered']
    %9 = vsyncpa [#allocation6], 0
    %10 = vsyncpa [#allocation7], 0
    // Predicated region
    $region2: #{tpu_custom_call.1} parent=1 // pred_check
      _
    $region3: #{tpu_custom_call.1} parent=1 // pred_check_branch
      %12 = sbr.rel (0) target = $region5
    $region4: #{tpu_custom_call.1} parent=1 // pred_region
      %14 = vsyncadd [#allocation6], 0
      %s15 = sshll.u32 %s0, 4
      %s16 = int_to_ptr.hbm [resolvable:$true] %s15
      %s17 = sshll.u32 [#allocation5], 4
      %s18 = int_to_ptr.vmem [resolvable:$true] %s17
      %23 = dma.hbm_to_vmem [thread:$0]  %s16, 1024, %s18, [#allocation6], 128, 128, 8
    $region5: #{tpu_custom_call.1} parent=1 // pred_fallthru
      _
    // Predicated region
    $region6: #{tpu_custom_call.1} parent=1 // pred_check
      _
    $region7: #{tpu_custom_call.1} parent=1 // pred_check_branch
      %25 = sbr.rel (0) target = $region9
    $region8: #{tpu_custom_call.1} parent=1 // pred_region
      _
    $region9: #{tpu_custom_call.1} parent=1 // pred_fallthru
      _
    // Predicated region
    $region10: #{tpu_custom_call.1} parent=1 // pred_check
      _
    $region11: #{tpu_custom_call.1} parent=1 // pred_check_branch
      %27 = sbr.rel (0) target = $region13
    $region12: #{tpu_custom_call.1} parent=1 // pred_region
      _
    $region13: #{tpu_custom_call.1} parent=1 // pred_fallthru
      _
    // Predicated region
    $region14: #{tpu_custom_call.1} parent=1 // pred_check
      _
    $region15: #{tpu_custom_call.1} parent=1 // pred_check_branch
      %29 = sbr.rel (0) target = $region17
    $region16: #{tpu_custom_call.1} parent=1 // pred_region
      %31 = dma.done [#allocation6], 1024
    $region17: #{tpu_custom_call.1} parent=1 // pred_fallthru
      _
    %p32 = scmp.eq.s32.totalorder 0, 0
    // Predicated region
    $region18: #{tpu_custom_call.1} parent=1 // pred_check
      %p33 = pneg %p32
    $region19: #{tpu_custom_call.1} parent=1 // pred_check_branch
      %35 = sbr.rel (%p33) target = $region21
    $region20: #{tpu_custom_call.1} parent=1 // pred_region
      %vm36 = vcmask 7168
      %37 = vst.msk [vmem:[#allocation2] sm:$0xff] %vm36, 0.0
      %vm38 = vcmask 261120
      %39 = vst.msk [vmem:[#allocation3] sm:$0xff] %vm38, 0.0
    $region21: #{tpu_custom_call.1} parent=1 // pred_fallthru
      _
    %v40 = vld [vmem:[#allocation5] sm:$0xff]
    %v41 = vld [vmem:[#allocation5 + $0x8] sm:$0xff]
    %v42 = vld [vmem:[#allocation5 + $0x10] sm:$0xff]
    %v43 = vld [vmem:[#allocation5 + $0x18] sm:$0xff]
    %v44 = vld [vmem:[#allocation5 + $0x20] sm:$0xff]
    %v45 = vld [vmem:[#allocation5 + $0x28] sm:$0xff]
    %v46 = vld [vmem:[#allocation5 + $0x30] sm:$0xff]
    %v47 = vld [vmem:[#allocation5 + $0x38] sm:$0xff]
    %v48 = vld [vmem:[%s1] sm:$0x1]
    %v50 = vperm.slane %v48, 0
    %v52 = vmul.f32 %v40, %v50
    %v53 = vmul.f32 %v41, %v50
    %v54 = vmul.f32 %v42, %v50
    %v55 = vmul.f32 %v43, %v50
    %v56 = vmul.f32 %v44, %v50
    %v57 = vmul.f32 %v45, %v50
    %v58 = vmul.f32 %v46, %v50
    %v59 = vmul.f32 %v47, %v50
    %vm60 = vcmask 261120
    %v61 = vsel %vm60, %v52, 0.0
    %62 = vadd.xlane.f32.xlu0 %v61
    %v63 = vpop.xlane.xlu0 %62
    %v64 = vsel %vm60, %v53, 0.0
    %65 = vadd.xlane.f32.xlu0 %v64
    %v66 = vpop.xlane.xlu0 %65
    %v67 = vsel %vm60, %v54, 0.0
    %68 = vadd.xlane.f32.xlu0 %v67
    %v69 = vpop.xlane.xlu0 %68
    %v70 = vsel %vm60, %v55, 0.0
    %71 = vadd.xlane.f32.xlu0 %v70
    %v72 = vpop.xlane.xlu0 %71
    %v73 = vsel %vm60, %v56, 0.0
    %74 = vadd.xlane.f32.xlu0 %v73
    %v75 = vpop.xlane.xlu0 %74
    %v76 = vsel %vm60, %v57, 0.0
    %77 = vadd.xlane.f32.xlu0 %v76
    %v78 = vpop.xlane.xlu0 %77
    %v79 = vsel %vm60, %v58, 0.0
    %80 = vadd.xlane.f32.xlu0 %v79
    %v81 = vpop.xlane.xlu0 %80
    %v82 = vsel %vm60, %v59, 0.0
    %83 = vadd.xlane.f32.xlu0 %v82
    %v84 = vpop.xlane.xlu0 %83
    %s85 = sld [smem:[#allocation4]]
    %v86 = vstv %s85
    %v87 = vadd.f32 %v63, %v86
    %v88 = vadd.f32 %v66, %v86
    %v89 = vadd.f32 %v69, %v86
    %v90 = vadd.f32 %v72, %v86
    %v91 = vadd.f32 %v75, %v86
    %v92 = vadd.f32 %v78, %v86
    %v93 = vadd.f32 %v81, %v86
    %v94 = vadd.f32 %v84, %v86
    %v95 = vtanh.pop %v87
    %v96 = vtanh.pop %v88
    %v97 = vtanh.pop %v89
    %v98 = vtanh.pop %v90
    %v99 = vtanh.pop %v91
    %v100 = vtanh.pop %v92
    %v101 = vtanh.pop %v93
    %v102 = vtanh.pop %v94
    %v103 = vmul.f32 %v95, 1.442695
    %v104 = vpow.pop %v103
    %v105 = vmul.f32 %v96, 1.442695
    %v106 = vpow.pop %v105
    %v107 = vmul.f32 %v97, 1.442695
    %v108 = vpow.pop %v107
    %v109 = vmul.f32 %v98, 1.442695
    %v110 = vpow.pop %v109
    %v111 = vmul.f32 %v99, 1.442695
    %v112 = vpow.pop %v111
    %v113 = vmul.f32 %v100, 1.442695
    %v114 = vpow.pop %v113
    %v115 = vmul.f32 %v101, 1.442695
    %v116 = vpow.pop %v115
    %v117 = vmul.f32 %v102, 1.442695
    %v118 = vpow.pop %v117
    %v119 = vld [vmem:[#allocation2] sm:$0xff]
    %v128 = vlaneseq
    %v129 = vand.u32 %v128, 127
    %v130 = vperm.slane %v104, %v129
    %v131 = vperm.slane %v106, %v129
    %v132 = vperm.slane %v108, %v129
    %v133 = vperm.slane %v110, %v129
    %v134 = vperm.slane %v112, %v129
    %v135 = vperm.slane %v114, %v129
    %v136 = vperm.slane %v116, %v129
    %v137 = vperm.slane %v118, %v129
    %vm138 = vcmask 1041409
    %v139 = vsel %vm138, %v131, %v130
    %vm140 = vcmask 1042434
    %v141 = vsel %vm140, %v132, %v139
    %vm142 = vcmask 1043459
    %v143 = vsel %vm142, %v133, %v141
    %vm144 = vcmask 1044484
    %v145 = vsel %vm144, %v134, %v143
    %vm146 = vcmask 1045509
    %v147 = vsel %vm146, %v135, %v145
    %vm148 = vcmask 1046534
    %v149 = vsel %vm148, %v136, %v147
    %vm150 = vcmask 1047559
    %v151 = vsel %vm150, %v137, %v149
    %vm153 = vcmask 64512
    %v154 = vsel %vm153, %v151, 0.0
    %155 = vadd.xlane.f32.xlu0 %v154
    %v156 = vpop.xlane.xlu0 %155
    %v157 = vadd.f32 %v119, %v156
    %vm158 = vcmask 7168
    %159 = vst.msk [vmem:[#allocation2] sm:$0xff] %vm158, %v157
    %v160 = vld [vmem:[#allocation3] sm:$0xff]
    %v161 = vmul.f32 %v104, %v40
    %v162 = vmul.f32 %v106, %v41
    %v163 = vmul.f32 %v108, %v42
    %v164 = vmul.f32 %v110, %v43
    %v165 = vmul.f32 %v112, %v44
    %v166 = vmul.f32 %v114, %v45
    %v167 = vmul.f32 %v116, %v46
    %v168 = vmul.f32 %v118, %v47
    %v169 = vsel %vm60, %v161, 0.0
    %v170 = vrot.slane %v169, 4
    %v171 = vadd.f32 %v169, %v170
    %v172 = vrot.slane %v171, 2
    %v173 = vadd.f32 %v171, %v172
    %v174 = vrot.slane %v173, 1
    %v175 = vadd.f32 %v173, %v174
    %v176 = vsel %vm60, %v162, 0.0
    %v177 = vrot.slane %v176, 4
    %v178 = vadd.f32 %v176, %v177
    %v179 = vrot.slane %v178, 2
    %v180 = vadd.f32 %v178, %v179
    %v181 = vrot.slane %v180, 1
    %v182 = vadd.f32 %v180, %v181
    %v183 = vsel %vm60, %v163, 0.0
    %v184 = vrot.slane %v183, 4
    %v185 = vadd.f32 %v183, %v184
    %v186 = vrot.slane %v185, 2
    %v187 = vadd.f32 %v185, %v186
    %v188 = vrot.slane %v187, 1
    %v189 = vadd.f32 %v187, %v188
    %v190 = vsel %vm60, %v164, 0.0
    %v191 = vrot.slane %v190, 4
    %v192 = vadd.f32 %v190, %v191
    %v193 = vrot.slane %v192, 2
    %v194 = vadd.f32 %v192, %v193
    %v195 = vrot.slane %v194, 1
    %v196 = vadd.f32 %v194, %v195
    %v197 = vsel %vm60, %v165, 0.0
    %v198 = vrot.slane %v197, 4
    %v199 = vadd.f32 %v197, %v198
    %v200 = vrot.slane %v199, 2
    %v201 = vadd.f32 %v199, %v200
    %v202 = vrot.slane %v201, 1
    %v203 = vadd.f32 %v201, %v202
    %v204 = vsel %vm60, %v166, 0.0
    %v205 = vrot.slane %v204, 4
    %v206 = vadd.f32 %v204, %v205
    %v207 = vrot.slane %v206, 2
    %v208 = vadd.f32 %v206, %v207
    %v209 = vrot.slane %v208, 1
    %v210 = vadd.f32 %v208, %v209
    %v211 = vsel %vm60, %v167, 0.0
    %v212 = vrot.slane %v211, 4
    %v213 = vadd.f32 %v211, %v212
    %v214 = vrot.slane %v213, 2
    %v215 = vadd.f32 %v213, %v214
    %v216 = vrot.slane %v215, 1
    %v217 = vadd.f32 %v215, %v216
    %v218 = vsel %vm60, %v168, 0.0
    %v219 = vrot.slane %v218, 4
    %v220 = vadd.f32 %v218, %v219
    %v221 = vrot.slane %v220, 2
    %v222 = vadd.f32 %v220, %v221
    %v223 = vrot.slane %v222, 1
    %v224 = vadd.f32 %v222, %v223
    %v233 = vsel %vm138, %v182, %v175
    %v234 = vsel %vm140, %v189, %v233
    %v235 = vsel %vm142, %v196, %v234
    %v236 = vsel %vm144, %v203, %v235
    %v237 = vsel %vm146, %v210, %v236
    %v238 = vsel %vm148, %v217, %v237
    %v239 = vsel %vm150, %v224, %v238
    %v241 = vadd.f32 %v160, %v239
    %242 = vst.msk [vmem:[#allocation3] sm:$0xff] %vm60, %v241
    // Predicated region
    $region22: #{tpu_custom_call.1} parent=1 // pred_check
      %p243 = pneg %p32
    $region23: #{tpu_custom_call.1} parent=1 // pred_check_branch
      %245 = sbr.rel (%p243) target = $region25
    $region24: #{tpu_custom_call.1} parent=1 // pred_region
      %v246 = vld [vmem:[#allocation3] sm:$0xff]
      %v247 = vld [vmem:[#allocation2] sm:$0xff]
      %v248 = vrcp.pop %v247
      %v249 = vmul.f32 %v247, %v248
      %v250 = vsub.f32 1.0, %v249
      %v251 = vmul.f32 %v248, %v250
      %v252 = vadd.f32 %v248, %v251
      %vm253 = vweird.f32 %v247
      %vm254 = vweird.f32 %v248
      %vm255 = vmor %vm253, %vm254
      %v256 = vsel %vm255, %v248, %v252
      %v257 = vand.u32 2147483647, %v247
      %vm258 = vcmp.eq.f32.partialorder %v257, 8.507059e+37
      %v259 = vand.u32 %v247, 2147483648
      %v260 = vor.u32 1.1754944e-38, %v259
      %v261 = vsel %vm258, %v260, %v256
      %263 = vset.pattern.permute.xlu0 0
      %264 = vperm.xlu0 %263, %v261
      %v265 = vpop.permute.xlu0 %264
      %v267 = vmul.f32 %v246, %v265
      %268 = vst.msk [vmem:[#allocation8] sm:$0xff] %vm60, %v267
    $region25: #{tpu_custom_call.1} parent=1 // pred_fallthru
      _
    // Predicated region
    $region26: #{tpu_custom_call.1} parent=1 // pred_check
      _
    $region27: #{tpu_custom_call.1} parent=1 // pred_check_branch
      %270 = sbr.rel (0) target = $region29
    $region28: #{tpu_custom_call.1} parent=1 // pred_region
      %272 = vsyncadd [#allocation7], 0
      %s274 = sshll.u32 [#allocation8], 4
      %s275 = int_to_ptr.vmem [resolvable:$true] %s274
      %s276 = sshll.u32 %s3, 4
      %s277 = int_to_ptr.hbm [resolvable:$true] %s276
      %279 = dma.vmem_to_hbm [thread:$0]  %s275, 128, %s277, [#allocation7]
    $region29: #{tpu_custom_call.1} parent=1 // pred_fallthru
      _
    // Predicated region
    $region30: #{tpu_custom_call.1} parent=1 // pred_check
      _
    $region31: #{tpu_custom_call.1} parent=1 // pred_check_branch
      %281 = sbr.rel (0) target = $region33
    $region32: #{tpu_custom_call.1} parent=1 // pred_region
      %283 = dma.done [#allocation7], 128
    $region33: #{tpu_custom_call.1} parent=1 // pred_fallthru
      _
    %284 = vsyncpa [#allocation6], 1
    %285 = vsyncpa [#allocation7], 1

</llo_original>
